<compile_context>
chip_gen: v6e
topology: v6e:2x2x1
jax: 0.10.0
libtpu: 0.0.40
codegen_flags: <defaults>
</compile_context>

<pallas_src>
from functools import partial

import jax
import jax.numpy as jnp
from jax import lax
from jax.experimental import pallas as pl
from jax.experimental.pallas import tpu as pltpu


def _sigmoid(x):
    # sigmoid(x) = 0.5*(tanh(x/2)+1): one EUP transcendental, no exp + divide.
    return 0.5 * (jnp.tanh(0.5 * x) + 1.0)


def _padded_bytes(block_shape, dtype):
    """VMEM bytes of one buffer, honouring (sublane, lane) tile padding."""
    item = jnp.dtype(dtype).itemsize
    packing = max(1, 4 // item)                  # rows packed per 32-bit sublane
    dims = (1, 1) + tuple(int(d) for d in block_shape)
    lead = 1
    for d in dims[:-2]:
        lead *= d
    sub = -(-dims[-2] // (8 * packing)) * (8 * packing)
    lane = -(-dims[-1] // 128) * 128
    return lead * sub * lane * item


def _vmem_limit(total_bytes):
    # padded, double-buffered estimate + slack, clamped for v7x (64 MiB phys).
    return int(min(max(total_bytes + (4 << 20), 32 << 20), 48 << 20))


def _pick_spatial_tile(hw, n_batch, est_fn, budget=24 << 20, cap=16384):
    """Largest lane-dense spatial tile that divides H*W, keeps the padded
    double-buffered VMEM estimate under budget, and leaves >= 2 grid steps
    for v7x megacore sharding when possible."""
    if hw <= 128 or hw % 128 != 0:
        return hw                                  # full-extent block
    ts = min(hw, cap)
    if hw % ts != 0:
        t = (ts // 128) * 128
        while t >= 128 and hw % t != 0:
            t -= 128
        ts = t if (t >= 128 and hw % t == 0) else hw
    while est_fn(ts) > budget and ts % 256 == 0:
        ts //= 2
    if n_batch == 1 and hw // ts < 2 and ts % 256 == 0:
        ts //= 2                                   # >= 2 parallel steps on v7x
    return ts


# --------------------------- kernel_size == 1 ------------------------------ #
def _reg_pointwise_kernel(x_ref, h_ref, c_ref, w_ref, b_ref, out_ref, xh_ref):
    # x_ref : (1, Cx, TS) cdt      h_ref : (1, Ch, TS) cdt
    # c_ref : (1, Ch, TS) f32      w_ref : (C4, Cin)   cdt
    # b_ref : (C4, 1)     f32      out_ref:(1, Ch, TS) f32
    # xh_ref: (Cin, TS)   cdt      write-once staging (NOT an RMW accumulator)
    cx = x_ref.shape[1]
    cin = xh_ref.shape[0]
    ch = out_ref.shape[1]

    # torch.cat([x, h], dim=1) folded into VMEM -> ONE deep MXU matmul.
    xh_ref[0:cx, :] = x_ref[0]
    xh_ref[cx:cin, :] = h_ref[0]
    conv = jnp.dot(w_ref[...], xh_ref[...],
                   preferred_element_type=jnp.float32) + b_ref[...]   # (C4, TS)

    # Fused gating epilogue: c_new = sigmoid(a)*tanh(b)*c + sigmoid(g)*tanh(d)
    a = _sigmoid(conv[0 * ch:1 * ch, :])
    b = jnp.tanh(conv[1 * ch:2 * ch, :])
    g = _sigmoid(conv[2 * ch:3 * ch, :])
    d = jnp.tanh(conv[3 * ch:4 * ch, :])
    out_ref[0] = (a * b * c_ref[0] + g * d).astype(out_ref.dtype)


# --------------------------- kernel_size  > 1 ------------------------------ #
def _reg_conv_kernel(x_ref, h_ref, c_ref, w_ref, b_ref, out_ref, col_ref, *,
                     ksize, dilation):
    # x_ref : (1, Hp, Wp, Cx) cdt    h_ref : (1, Hp, Wp, Ch) cdt
    # c_ref : (1, H, W, Ch)   f32    w_ref : (R, C4) cdt, R = K*K*(Cx+Ch)
    # b_ref : (1, C4)         f32    out_ref:(1, H, W, Ch)   f32
    # col_ref:(M, R)          cdt    im2col staging (write-once), M = H*W
    _, H, W, ch = out_ref.shape
    cx = x_ref.shape[-1]
    chh = h_ref.shape[-1]
    M = H * W

    # im2col: stack the K*K dilated taps (x taps first, then h taps -- matches
    # the pre-merged weight row order) along the contraction axis.
    col = 0
    for ref, cc in ((x_ref, cx), (h_ref, chh)):
        for kh in range(ksize):
            for kw in range(ksize):
                oh, ow = kh * dilation, kw * dilation
                col_ref[:, col:col + cc] = (
                    ref[0, oh:oh + H, ow:ow + W, :].reshape(M, cc))
                col += cc

    # ONE deep matmul; no per-tap accumulator read-modify-write passes.
    conv = jnp.dot(col_ref[...], w_ref[...],
                   preferred_element_type=jnp.float32) + b_ref[...]   # (M, C4)

    a = _sigmoid(conv[:, 0 * ch:1 * ch])
    b = jnp.tanh(conv[:, 1 * ch:2 * ch])
    g = _sigmoid(conv[:, 2 * ch:3 * ch])
    d = jnp.tanh(conv[:, 3 * ch:4 * ch])
    out = a * b * c_ref[0].reshape(M, ch) + g * d
    out_ref[0] = out.reshape(H, W, ch).astype(out_ref.dtype)


# ------------------------------- wrapper ----------------------------------- #
def regulator_block(x, state, weight, bias, *, kernel_size=1,
                    compute_dtype=jnp.float32):
    """Fused RegulatorBlock.forward.

    x:       (N, x_in, H, W)  float32, NCHW (PyTorch layout)
    state:   (c, h), each (N, ic, H, W) float32
    weight:  (4*ic, x_in+ic, k, k)  float32 (PyTorch OIHW)
    bias:    (4*ic,)                float32
    returns: new cell state c, (N, ic, H, W) float32
    """
    c, h = state
    N, Cx, H, W = x.shape
    Ch = h.shape[1]
    C4, cin_total, KH, KW = weight.shape
    Cin = Cx + Ch
    assert cin_total == Cin and C4 == 4 * Ch
    assert KH == KW == kernel_size
    assert kernel_size % 2 == 1, "odd kernel_size only (module default is 1)"

    dilation = 2
    pad = (kernel_size // 2) * 2                 # exactly PyTorch: padding=k//2*2
    assert pad == dilation * (kernel_size // 2)  # -> same-size output

    cdt = jnp.dtype(compute_dtype)
    f32 = jnp.float32
    HW = H * W

    if kernel_size == 1:
        # ---- specialized flat path: no transposes, no pads, lane-dense ---- #
        x_f = x.reshape(N, Cx, HW)               # free reshapes: NCHW is already
        h_f = h.reshape(N, Ch, HW)               # channel-major / spatial-minor
        c_f = c.reshape(N, Ch, HW)
        w2d = weight.reshape(C4, Cin)            # (C4, Cin, 1, 1) -> (C4, Cin)
        if cdt != jnp.dtype(f32):
            x_f, h_f, w2d = x_f.astype(cdt), h_f.astype(cdt), w2d.astype(cdt)
        b2d = bias.reshape(C4, 1).astype(f32)

        def est(ts):                             # padded + double-buffered
            blocks = (_padded_bytes((1, Cx, ts), cdt)
                      + _padded_bytes((1, Ch, ts), cdt)
                      + 2 * _padded_bytes((1, Ch, ts), f32)      # c + out
                      + _padded_bytes((C4, Cin), cdt)
                      + _padded_bytes((C4, 1), f32))
            scratch = _padded_bytes((Cin, ts), cdt)
            live = (_padded_bytes((C4, ts), f32)
                    + 4 * _padded_bytes((Ch, ts), f32))
            return 2 * blocks + scratch + live

        ts = _pick_spatial_tile(HW, N, est)
        assert HW % ts == 0
        grid = (N, HW // ts)

        out_f = pl.pallas_call(
            _reg_pointwise_kernel,
            out_shape=jax.ShapeDtypeStruct((N, Ch, HW), f32),
            grid=grid,
            in_specs=[
                pl.BlockSpec((1, Cx, ts), lambda n, s: (n, 0, s)),
                pl.BlockSpec((1, Ch, ts), lambda n, s: (n, 0, s)),
                pl.BlockSpec((1, Ch, ts), lambda n, s: (n, 0, s)),
                pl.BlockSpec((C4, Cin), lambda n, s: (0, 0)),
                pl.BlockSpec((C4, 1), lambda n, s: (0, 0)),
            ],
            out_specs=pl.BlockSpec((1, Ch, ts), lambda n, s: (n, 0, s)),
            scratch_shapes=[pltpu.VMEM((Cin, ts), cdt)],
            compiler_params=pltpu.CompilerParams(
                dimension_semantics=("parallel", "parallel"),
                vmem_limit_bytes=_vmem_limit(est(ts)),
            ),
            cost_estimate=pl.CostEstimate(
                flops=2 * N * HW * Cin * C4 + 8 * N * HW * Ch,
                transcendentals=4 * N * HW * Ch,
                bytes_accessed=(x_f.size + h_f.size + w2d.size) * cdt.itemsize
                               + (c_f.size + N * Ch * HW + 2 * C4) * 4,
            ),
        )(x_f, h_f, c_f, w2d, b2d)
        return out_f.reshape(N, Ch, H, W)

    # ---- general odd kernel_size (dilated conv), channels-last im2col ---- #
    # TODO(synk): fold these NCHW<->NHWC transposes and the spatial zero-pad
    #             into the kernel (masked boundary taps / NHWC end-to-end), and
    #             add halo'd H tiling (pl.Element or manual DMA) so feature maps
    #             larger than VMEM also fit v7x's 64 MiB.
    x_nhwc = jnp.transpose(x, (0, 2, 3, 1))
    h_nhwc = jnp.transpose(h, (0, 2, 3, 1))
    c_nhwc = jnp.transpose(c, (0, 2, 3, 1))
    pw = ((0, 0), (pad, pad), (pad, pad), (0, 0))
    x_nhwc = jnp.pad(x_nhwc, pw)
    h_nhwc = jnp.pad(h_nhwc, pw)
    Hp, Wp = H + 2 * pad, W + 2 * pad

    # OIHW -> merged im2col weight (R, C4): rows = [x taps | h taps], tap-major,
    # matching the column order the kernel writes into its staging buffer.
    K = kernel_size
    R = K * K * Cin
    wx = jnp.transpose(weight[:, :Cx], (2, 3, 1, 0)).reshape(K * K * Cx, C4)
    wh = jnp.transpose(weight[:, Cx:], (2, 3, 1, 0)).reshape(K * K * Ch, C4)
    w_r = jnp.concatenate([wx, wh], axis=0)
    if cdt != jnp.dtype(f32):
        x_nhwc = x_nhwc.astype(cdt)
        h_nhwc = h_nhwc.astype(cdt)
        w_r = w_r.astype(cdt)
    b2d = bias.reshape(1, C4).astype(f32)

    M = HW
    est = (2 * (_padded_bytes((1, Hp, Wp, Cx), cdt)
                + _padded_bytes((1, Hp, Wp, Ch), cdt)
                + 2 * _padded_bytes((1, H, W, Ch), f32)
                + _padded_bytes((R, C4), cdt)
                + _padded_bytes((1, C4), f32))
           + _padded_bytes((M, R), cdt)                       # im2col staging
           + _padded_bytes((M, C4), f32)
           + 4 * _padded_bytes((M, Ch), f32))

    out_nhwc = pl.pallas_call(
        partial(_reg_conv_kernel, ksize=K, dilation=dilation),
        out_shape=jax.ShapeDtypeStruct((N, H, W, Ch), f32),
        grid=(N,),
        in_specs=[
            pl.BlockSpec((1, Hp, Wp, Cx), lambda n: (n, 0, 0, 0)),
            pl.BlockSpec((1, Hp, Wp, Ch), lambda n: (n, 0, 0, 0)),
            pl.BlockSpec((1, H, W, Ch), lambda n: (n, 0, 0, 0)),
            pl.BlockSpec((R, C4), lambda n: (0, 0)),
            pl.BlockSpec((1, C4), lambda n: (0, 0)),
        ],
        out_specs=pl.BlockSpec((1, H, W, Ch), lambda n: (n, 0, 0, 0)),
        scratch_shapes=[pltpu.VMEM((M, R), cdt)],
        compiler_params=pltpu.CompilerParams(
            dimension_semantics=("parallel",),
            vmem_limit_bytes=_vmem_limit(est),
        ),
        cost_estimate=pl.CostEstimate(
            flops=2 * N * HW * R * C4 + 8 * N * HW * Ch,
            transcendentals=4 * N * HW * Ch,
            bytes_accessed=(x_nhwc.size + h_nhwc.size + w_r.size) * cdt.itemsize
                           + (c_nhwc.size + N * HW * Ch + 2 * C4) * 4,
        ),
    )(x_nhwc, h_nhwc, c_nhwc, w_r, b2d)
    return jnp.transpose(out_nhwc, (0, 3, 1, 2))


def _reference(x, state, weight, bias, kernel_size=1):
    """Pure-JAX reference matching PyTorch RegulatorBlock.forward."""
    c, h = state
    dilation = 2
    pad = (kernel_size // 2) * 2
    xh = jnp.concatenate([x, h], axis=1)
    conv = lax.conv_general_dilated(
        xh, weight, window_strides=(1, 1),
        padding=((pad, pad), (pad, pad)),
        rhs_dilation=(dilation, dilation),
        dimension_numbers=("NCHW", "OIHW", "NCHW"),
    ) + bias.reshape(1, -1, 1, 1)
    a, b, g, d = jnp.split(conv, 4, axis=1)
    return (jax.nn.sigmoid(a) * jnp.tanh(b) * c
            + jax.nn.sigmoid(g) * jnp.tanh(d))


if __name__ == "__main__":
    key = jax.random.PRNGKey(0)
    kx, khid, kc, kwgt, kb = jax.random.split(key, 5)

    N, x_in, ic, H, W = 2, 4, 4, 16, 16
    C4 = 4 * ic

    x = jax.random.normal(kx, (N, x_in, H, W), dtype=jnp.float32)
    h = jax.random.normal(khid, (N, ic, H, W), dtype=jnp.float32)
    c = jax.random.normal(kc, (N, ic, H, W), dtype=jnp.float32)
    bias = jax.random.normal(kb, (C4,), dtype=jnp.float32) * 0.1

    def run_case(kernel_size, compute_dtype, tol):
        wk = jax.random.fold_in(kwgt, kernel_size)
        w = jax.random.normal(
            wk, (C4, x_in + ic, kernel_size, kernel_size), dtype=jnp.float32
        ) * 0.1
        out = regulator_block(x, (c, h), w, bias, kernel_size=kernel_size,
                              compute_dtype=compute_dtype)
        out = jax.block_until_ready(out)
        ref = _reference(x, (c, h), w, bias, kernel_size=kernel_size)
        assert out.shape == (N, ic, H, W)
        err = jnp.max(jnp.abs(out - ref))
        assert jnp.allclose(out, ref, rtol=tol, atol=tol), (
            f"mismatch ks={kernel_size} dtype={jnp.dtype(compute_dtype)}: "
            f"max_abs_err={err}")

    # Default module config: kernel_size=1 (pointwise conv), f32.
    run_case(1, jnp.float32, 2e-3)
    # General odd kernel_size with dilation=2 / padding=2 (same-size output).
    run_case(3, jnp.float32, 2e-3)
    # bf16 MXU inputs with f32 accumulation (v6e/v7x fast path); looser tol
    # because inputs are rounded to bf16 while the reference stays f32.
    run_case(1, jnp.bfloat16, 5e-2)

    print("KERNEL_OK")
</pallas_src>

<mosaic_0001>
module attributes {stable_mosaic.version = 11 : i64} {
  func.func @_reg_pointwise_kernel(%arg0: i32, %arg1: i32, %arg2: memref<1x4x256xf32, #tpu.memory_space<vmem>>, %arg3: memref<1x4x256xf32, #tpu.memory_space<vmem>>, %arg4: memref<1x4x256xf32, #tpu.memory_space<vmem>>, %arg5: memref<16x8xf32, #tpu.memory_space<vmem>>, %arg6: memref<16x1xf32, #tpu.memory_space<vmem>>, %arg7: memref<1x4x256xf32, #tpu.memory_space<vmem>>, %arg8: memref<8x256xf32, #tpu.memory_space<vmem>>) attributes {dimension_semantics = [#tpu.dimension_semantics<parallel>, #tpu.dimension_semantics<parallel>], iteration_bounds = array<i64: 2, 1>, scalar_prefetch = 0 : i64, scratch_operands = 1 : i64, tpu.core_type = #tpu.core_type<tc>, window_params = [{transform_indices = @transform_0, window_bounds = array<i64: 1, 4, 256>}, {transform_indices = @transform_1, window_bounds = array<i64: 1, 4, 256>}, {transform_indices = @transform_2, window_bounds = array<i64: 1, 4, 256>}, {pipeline_mode = #tpu.pipeline_mode<synchronous>, transform_indices = @transform_3, window_bounds = array<i64: 16, 8>}, {pipeline_mode = #tpu.pipeline_mode<synchronous>, transform_indices = @transform_4, window_bounds = array<i64: 16, 1>}, {transform_indices = @transform_5, window_bounds = array<i64: 1, 4, 256>}]} {
    %c0 = arith.constant 0 : index
    %c0_0 = arith.constant 0 : index
    %c0_1 = arith.constant 0 : index
    %0 = vector.load %arg2[%c0, %c0_0, %c0_1] : memref<1x4x256xf32, #tpu.memory_space<vmem>>, vector<1x4x256xf32>
    %1 = vector.shape_cast %0 : vector<1x4x256xf32> to vector<4x256xf32>
    %c0_2 = arith.constant 0 : index
    %c0_3 = arith.constant 0 : index
    %2 = vector.load %arg8[%c0_2, %c0_3] : memref<8x256xf32, #tpu.memory_space<vmem>>, vector<4x256xf32>
    tpu.vector_store %arg8[%c0_2, %c0_3], %1 {strides = array<i32>} : memref<8x256xf32, #tpu.memory_space<vmem>>, vector<4x256xf32>,
    %c0_4 = arith.constant 0 : index
    %c0_5 = arith.constant 0 : index
    %c0_6 = arith.constant 0 : index
    %3 = vector.load %arg3[%c0_4, %c0_5, %c0_6] : memref<1x4x256xf32, #tpu.memory_space<vmem>>, vector<1x4x256xf32>
    %4 = vector.shape_cast %3 : vector<1x4x256xf32> to vector<4x256xf32>
    %c4 = arith.constant 4 : index
    %c0_7 = arith.constant 0 : index
    %5 = vector.load %arg8[%c4, %c0_7] : memref<8x256xf32, #tpu.memory_space<vmem>>, vector<4x256xf32>
    tpu.vector_store %arg8[%c4, %c0_7], %4 {strides = array<i32>} : memref<8x256xf32, #tpu.memory_space<vmem>>, vector<4x256xf32>,
    %c0_8 = arith.constant 0 : index
    %c0_9 = arith.constant 0 : index
    %6 = vector.load %arg5[%c0_8, %c0_9] : memref<16x8xf32, #tpu.memory_space<vmem>>, vector<16x8xf32>
    %c0_10 = arith.constant 0 : index
    %c0_11 = arith.constant 0 : index
    %7 = vector.load %arg8[%c0_10, %c0_11] : memref<8x256xf32, #tpu.memory_space<vmem>>, vector<8x256xf32>
    %cst = arith.constant dense<0.000000e+00> : vector<16x256xf32>
    %8 = tpu.matmul %6, %7, %cst {dimension_numbers = #tpu.dot_dimension_numbers<[1], [0], [0], [1], [0, 0, 1, 1], [], []>} : vector<16x8xf32>, vector<8x256xf32>, vector<16x256xf32> -> vector<16x256xf32>
    %c0_12 = arith.constant 0 : index
    %c0_13 = arith.constant 0 : index
    %9 = vector.load %arg6[%c0_12, %c0_13] : memref<16x1xf32, #tpu.memory_space<vmem>>, vector<16x1xf32>
    %10 = vector.broadcast %9 : vector<16x1xf32> to vector<16x256xf32>
    %11 = arith.addf %8, %10 : vector<16x256xf32>
    %12 = vector.extract_strided_slice %11 {offsets = [0, 0], sizes = [4, 256], strides = [1, 1]} : vector<16x256xf32> to vector<4x256xf32>
    %cst_14 = arith.constant 5.000000e-01 : f32
    %13 = vector.broadcast %cst_14 : f32 to vector<4x256xf32>
    %14 = arith.mulf %13, %12 : vector<4x256xf32>
    %15 = math.tanh %14 : vector<4x256xf32>
    %cst_15 = arith.constant 1.000000e+00 : f32
    %16 = vector.broadcast %cst_15 : f32 to vector<4x256xf32>
    %17 = arith.addf %15, %16 : vector<4x256xf32>
    %cst_16 = arith.constant 5.000000e-01 : f32
    %18 = vector.broadcast %cst_16 : f32 to vector<4x256xf32>
    %19 = arith.mulf %18, %17 : vector<4x256xf32>
    %20 = vector.extract_strided_slice %11 {offsets = [4, 0], sizes = [4, 256], strides = [1, 1]} : vector<16x256xf32> to vector<4x256xf32>
    %21 = math.tanh %20 : vector<4x256xf32>
    %22 = vector.extract_strided_slice %11 {offsets = [8, 0], sizes = [4, 256], strides = [1, 1]} : vector<16x256xf32> to vector<4x256xf32>
    %cst_17 = arith.constant 5.000000e-01 : f32
    %23 = vector.broadcast %cst_17 : f32 to vector<4x256xf32>
    %24 = arith.mulf %23, %22 : vector<4x256xf32>
    %25 = math.tanh %24 : vector<4x256xf32>
    %cst_18 = arith.constant 1.000000e+00 : f32
    %26 = vector.broadcast %cst_18 : f32 to vector<4x256xf32>
    %27 = arith.addf %25, %26 : vector<4x256xf32>
    %cst_19 = arith.constant 5.000000e-01 : f32
    %28 = vector.broadcast %cst_19 : f32 to vector<4x256xf32>
    %29 = arith.mulf %28, %27 : vector<4x256xf32>
    %30 = vector.extract_strided_slice %11 {offsets = [12, 0], sizes = [4, 256], strides = [1, 1]} : vector<16x256xf32> to vector<4x256xf32>
    %31 = math.tanh %30 : vector<4x256xf32>
    %32 = arith.mulf %19, %21 : vector<4x256xf32>
    %c0_20 = arith.constant 0 : index
    %c0_21 = arith.constant 0 : index
    %c0_22 = arith.constant 0 : index
    %33 = vector.load %arg4[%c0_20, %c0_21, %c0_22] : memref<1x4x256xf32, #tpu.memory_space<vmem>>, vector<1x4x256xf32>
    %34 = vector.shape_cast %33 : vector<1x4x256xf32> to vector<4x256xf32>
    %35 = arith.mulf %32, %34 : vector<4x256xf32>
    %36 = arith.mulf %29, %31 : vector<4x256xf32>
    %37 = arith.addf %35, %36 : vector<4x256xf32>
    %c0_23 = arith.constant 0 : index
    %c0_24 = arith.constant 0 : index
    %c0_25 = arith.constant 0 : index
    %38 = vector.load %arg7[%c0_23, %c0_24, %c0_25] : memref<1x4x256xf32, #tpu.memory_space<vmem>>, vector<1x4x256xf32>
    %39 = vector.shape_cast %38 : vector<1x4x256xf32> to vector<4x256xf32>
    %40 = vector.shape_cast %37 : vector<4x256xf32> to vector<1x4x256xf32>
    tpu.vector_store %arg7[%c0_23, %c0_24, %c0_25], %40 {strides = array<i32>} : memref<1x4x256xf32, #tpu.memory_space<vmem>>, vector<1x4x256xf32>,
    return
  }
  func.func @transform_0(%arg0: i32, %arg1: i32) -> (i32, i32, i32) {
    %c0_i32 = arith.constant 0 : i32
    %c0_i32_0 = arith.constant 0 : i32
    return %arg0, %c0_i32, %arg1 : i32, i32, i32
  }
  func.func @transform_1(%arg0: i32, %arg1: i32) -> (i32, i32, i32) {
    %c0_i32 = arith.constant 0 : i32
    %c0_i32_0 = arith.constant 0 : i32
    return %arg0, %c0_i32, %arg1 : i32, i32, i32
  }
  func.func @transform_2(%arg0: i32, %arg1: i32) -> (i32, i32, i32) {
    %c0_i32 = arith.constant 0 : i32
    %c0_i32_0 = arith.constant 0 : i32
    return %arg0, %c0_i32, %arg1 : i32, i32, i32
  }
  func.func @transform_3(%arg0: i32, %arg1: i32) -> (i32, i32) {
    %c0_i32 = arith.constant 0 : i32
    %c0_i32_0 = arith.constant 0 : i32
    %c0_i32_1 = arith.constant 0 : i32
    return %c0_i32, %c0_i32_0 : i32, i32
  }
  func.func @transform_4(%arg0: i32, %arg1: i32) -> (i32, i32) {
    %c0_i32 = arith.constant 0 : i32
    %c0_i32_0 = arith.constant 0 : i32
    %c0_i32_1 = arith.constant 0 : i32
    return %c0_i32, %c0_i32_0 : i32, i32
  }
  func.func @transform_5(%arg0: i32, %arg1: i32) -> (i32, i32, i32) {
    %c0_i32 = arith.constant 0 : i32
    %c0_i32_0 = arith.constant 0 : i32
    return %arg0, %c0_i32, %arg1 : i32, i32, i32
  }
}

</mosaic_0001>

<llo_original>
// kernel: tpu_custom_call.1
$region0: #{tpu_custom_call.1}
  #allocation0 [shape = 'u32[]', space=smem, size = 0x4, offset = 0x4, fixed_abs, tag = 'smem constant byte address 0x4 - core index']
  #allocation1 [shape = 'u32[144,128]{1,0:T(1,128)}', space=vmem, size = 0x12000, scoped, tag = 'internal scratch']
  #allocation2 [shape = 'f32[8,256]{1,0:T(8,128)}', space=vmem, size = 0x2000, scoped, tag = 'scratch operand']
  %s0 = inlined_call_operand.vmem [shape: f32[2,4,256], index: 0, kind: input, shape index: {}]
  %s1 = inlined_call_operand.vmem [shape: f32[2,4,256], index: 1, kind: input, shape index: {}]
  %s2 = inlined_call_operand.hbm [shape: f32[2,4,256], index: 2, kind: input, shape index: {}]
  %s3 = inlined_call_operand.vmem [shape: f32[16,8], index: 3, kind: input, shape index: {}]
  %s4 = inlined_call_operand.vmem [shape: f32[16,1], index: 4, kind: input, shape index: {}]
  %s5 = inlined_call_operand.hbm [shape: f32[2,4,256], index: 5, kind: output, shape index: {}]
  %s6 = sld [smem:[#allocation0]]
  $region57: #{tpu_custom_call.1} parent=0
    _
  %s8 = ssub.s32 1, %s6
  %s9 = scalar_select 0, %s8, %s6
  $region1: #{tpu_custom_call.1} parent=0
    #allocation3 [shape = 'u8[8192]{0}', space=vmem, size = 0x2000, scoped, tag = 'input window, operand 2']
    #allocation4 [shape = 's32[2]{0}', space=sflag, size = 0x8, scoped, tag = 'scoped memory for tpu_custom_call.1']
    #allocation5 [shape = 's32[2]{0}', space=sflag, size = 0x8, scoped, tag = 'scoped memory for tpu_custom_call.1']
    #allocation6 [shape = 'u8[8192]{0}', space=vmem, size = 0x2000, scoped, tag = 'output window, operand 0']
    %10 = vsyncpa [#allocation4], 0
    %s11 = scalar_lea.sflag [#allocation4], 1
    %12 = vsyncpa %s11, 0
    %13 = vsyncpa [#allocation5], 0
    %s14 = scalar_lea.sflag [#allocation5], 1
    %15 = vsyncpa %s14, 0
    loop: start=0, step=1, limit=4
    $region2: #{tpu_custom_call.1} parent=1 // loop_pre_header
      _
    $region3: #{tpu_custom_call.1} parent=1 // loop_header
      %s17 = sphi 0, %s21
      %p18 = scmp.ge.s32.totalorder %s17, 4
      %s24 = sphi 0, %s36
      %s25 = sphi 0, %s32
      %s26 = sphi 0, %s24
      %s27 = sphi 0, %s25
      %s28 = sphi 0, %s26
      %s29 = sphi 0, %s27
      %s41 = sphi 0, %s43
      %s44 = sphi 0, %s41
      %s45 = sphi 0, %s44
      %s61 = sphi 0, %s45
      %s69 = sphi 0, %s71
      %s72 = sphi 0, %s69
      %s73 = sphi 0, %s72
      %s89 = sphi 0, %s73
      %s97 = sphi 0, %s99
      %s100 = sphi 0, %s97
      %s101 = sphi 0, %s100
      %s117 = sphi 0, %s101
      %s121 = sphi 0, %s121
      %s123 = sphi 0, %s121
      %s124 = sphi 0, %s123
      %s138 = sphi 0, %s124
      %s142 = sphi 0, %s142
      %s144 = sphi 0, %s142
      %s145 = sphi 0, %s144
      %s159 = sphi 0, %s145
      %s167 = sphi 0, %s169
      %s170 = sphi 0, %s167
      %s171 = sphi 0, %s170
      %s187 = sphi 0, %s171
    $region4: #{tpu_custom_call.1} parent=1 // loop_header_branch
      %20 = sbr.rel (%p18) target = $region8
    $region5: #{tpu_custom_call.1} parent=1 // loop_body
      %s22 = ssub.s32 %s17, 1
      %s23 = ssub.s32 %s17, 2
      %s30 = sadd.s32 1, %s25
      %p31 = scmp.ge.s32.totalorder %s30, 1
      %s32 = scalar_select %p31, 0, %s30
      %s33 = sadd.s32 1, %s24
      %s34 = scalar_select %p31, %s33, %s24
      %p35 = scmp.ge.s32.totalorder %s34, 2
      %s36 = scalar_select %p35, 0, %s34
      %s37 = ssub.s32 %s24, %s36
      %s38 = ssub.s32 %s25, %s32
      %s39 = sor.u32 %s37, %s38
      %p40 = scmp.eq.s32.totalorder %s39, 0
      %s42 = sadd.s32 %s41, 1
      %s43 = scalar_select %p40, %s41, %s42
      %p46 = pneg %p40
      %p47 = scmp.eq.s32.totalorder %s17, 1
      %p48 = por %p46, %p47
      %p49 = scmp.ne.s32.totalorder %s41, %s44
      %p50 = scmp.eq.s32.totalorder %s17, 0
      %p51 = por %p49, %p50
      %p52 = scmp.ne.s32.totalorder %s41, %s44
      %p53 = scmp.eq.s32.totalorder %s22, 1
      %p54 = por %p52, %p53
      %p55 = scmp.ne.s32.totalorder %s44, %s45
      %p56 = scmp.eq.s32.totalorder %s22, 0
      %p57 = por %p55, %p56
      %p58 = scmp.ne.s32.totalorder %s44, %s45
      %p59 = scmp.eq.s32.totalorder %s23, 1
      %p60 = por %p58, %p59
      %p62 = scmp.ne.s32.totalorder %s45, %s61
      %p63 = scmp.eq.s32.totalorder %s23, 0
      %p64 = por %p62, %p63
      %s65 = ssub.s32 %s24, %s36
      %s66 = ssub.s32 %s25, %s32
      %s67 = sor.u32 %s65, %s66
      %p68 = scmp.eq.s32.totalorder %s67, 0
      %s70 = sadd.s32 %s69, 1
      %s71 = scalar_select %p68, %s69, %s70
      %p74 = pneg %p68
      %p75 = scmp.eq.s32.totalorder %s17, 1
      %p76 = por %p74, %p75
      %p77 = scmp.ne.s32.totalorder %s69, %s72
      %p78 = scmp.eq.s32.totalorder %s17, 0
      %p79 = por %p77, %p78
      %p80 = scmp.ne.s32.totalorder %s69, %s72
      %p81 = scmp.eq.s32.totalorder %s22, 1
      %p82 = por %p80, %p81
      %p83 = scmp.ne.s32.totalorder %s72, %s73
      %p84 = scmp.eq.s32.totalorder %s22, 0
      %p85 = por %p83, %p84
      %p86 = scmp.ne.s32.totalorder %s72, %s73
      %p87 = scmp.eq.s32.totalorder %s23, 1
      %p88 = por %p86, %p87
      %p90 = scmp.ne.s32.totalorder %s73, %s89
      %p91 = scmp.eq.s32.totalorder %s23, 0
      %p92 = por %p90, %p91
      %s93 = ssub.s32 %s24, %s36
      %s94 = ssub.s32 %s25, %s32
      %s95 = sor.u32 %s93, %s94
      %p96 = scmp.eq.s32.totalorder %s95, 0
      %s98 = sadd.s32 %s97, 1
      %s99 = scalar_select %p96, %s97, %s98
      %p102 = pneg %p96
      %p103 = scmp.eq.s32.totalorder %s17, 1
      %p104 = por %p102, %p103
      %p105 = scmp.ne.s32.totalorder %s97, %s100
      %p106 = scmp.eq.s32.totalorder %s17, 0
      %p107 = por %p105, %p106
      %p108 = scmp.ne.s32.totalorder %s97, %s100
      %p109 = scmp.eq.s32.totalorder %s22, 1
      %p110 = por %p108, %p109
      %p111 = scmp.ne.s32.totalorder %s100, %s101
      %p112 = scmp.eq.s32.totalorder %s22, 0
      %p113 = por %p111, %p112
      %p114 = scmp.ne.s32.totalorder %s100, %s101
      %p115 = scmp.eq.s32.totalorder %s23, 1
      %p116 = por %p114, %p115
      %p118 = scmp.ne.s32.totalorder %s101, %s117
      %p119 = scmp.eq.s32.totalorder %s23, 0
      %p120 = por %p118, %p119
      %s122 = sadd.s32 %s121, 1
      %p125 = scmp.eq.s32.totalorder %s17, 1
      %p126 = scmp.ne.s32.totalorder %s121, %s123
      %p127 = scmp.eq.s32.totalorder %s17, 0
      %p128 = por %p126, %p127
      %p129 = scmp.ne.s32.totalorder %s121, %s123
      %p130 = scmp.eq.s32.totalorder %s22, 1
      %p131 = por %p129, %p130
      %p132 = scmp.ne.s32.totalorder %s123, %s124
      %p133 = scmp.eq.s32.totalorder %s22, 0
      %p134 = por %p132, %p133
      %p135 = scmp.ne.s32.totalorder %s123, %s124
      %p136 = scmp.eq.s32.totalorder %s23, 1
      %p137 = por %p135, %p136
      %p139 = scmp.ne.s32.totalorder %s124, %s138
      %p140 = scmp.eq.s32.totalorder %s23, 0
      %p141 = por %p139, %p140
      %s143 = sadd.s32 %s142, 1
      %p146 = scmp.eq.s32.totalorder %s17, 1
      %p147 = scmp.ne.s32.totalorder %s142, %s144
      %p148 = scmp.eq.s32.totalorder %s17, 0
      %p149 = por %p147, %p148
      %p150 = scmp.ne.s32.totalorder %s142, %s144
      %p151 = scmp.eq.s32.totalorder %s22, 1
      %p152 = por %p150, %p151
      %p153 = scmp.ne.s32.totalorder %s144, %s145
      %p154 = scmp.eq.s32.totalorder %s22, 0
      %p155 = por %p153, %p154
      %p156 = scmp.ne.s32.totalorder %s144, %s145
      %p157 = scmp.eq.s32.totalorder %s23, 1
      %p158 = por %p156, %p157
      %p160 = scmp.ne.s32.totalorder %s145, %s159
      %p161 = scmp.eq.s32.totalorder %s23, 0
      %p162 = por %p160, %p161
      %s163 = ssub.s32 %s24, %s36
      %s164 = ssub.s32 %s25, %s32
      %s165 = sor.u32 %s163, %s164
      %p166 = scmp.eq.s32.totalorder %s165, 0
      %s168 = sadd.s32 %s167, 1
      %s169 = scalar_select %p166, %s167, %s168
      %p172 = pneg %p166
      %p173 = scmp.eq.s32.totalorder %s17, 1
      %p174 = por %p172, %p173
      %p175 = scmp.ne.s32.totalorder %s167, %s170
      %p176 = scmp.eq.s32.totalorder %s17, 0
      %p177 = por %p175, %p176
      %p178 = scmp.ne.s32.totalorder %s167, %s170
      %p179 = scmp.eq.s32.totalorder %s22, 1
      %p180 = por %p178, %p179
      %p181 = scmp.ne.s32.totalorder %s170, %s171
      %p182 = scmp.eq.s32.totalorder %s22, 0
      %p183 = por %p181, %p182
      %p184 = scmp.ne.s32.totalorder %s170, %s171
      %p185 = scmp.eq.s32.totalorder %s23, 1
      %p186 = por %p184, %p185
      %p188 = scmp.ne.s32.totalorder %s171, %s187
      %p189 = scmp.eq.s32.totalorder %s23, 0
      %p190 = por %p188, %p189
      %p191 = scmp.le.s32.totalorder 1, %s17
      %p192 = scmp.lt.s32.totalorder %s17, 3
      %p193 = pnand %p191, %p192
      %p194 = pneg %p193
      // Predicated region
      $region9: #{tpu_custom_call.1} parent=5 // pred_check
        _
      $region10: #{tpu_custom_call.1} parent=5 // pred_check_branch
        %196 = sbr.rel (%p193) target = $region12
      $region11: #{tpu_custom_call.1} parent=5 // pred_region
        %s197 = ssub.s32 %s17, 1
        // Predicated region
        $region13: #{tpu_custom_call.1} parent=11 // pred_check
          %p198 = pneg %p134
        $region14: #{tpu_custom_call.1} parent=11 // pred_check_branch
          %200 = sbr.rel (%p198) target = $region16
        $region15: #{tpu_custom_call.1} parent=11 // pred_region
          _
        $region16: #{tpu_custom_call.1} parent=11 // pred_fallthru
          _
        // Predicated region
        $region17: #{tpu_custom_call.1} parent=11 // pred_check
          %p201 = pneg %p155
        $region18: #{tpu_custom_call.1} parent=11 // pred_check_branch
          %203 = sbr.rel (%p201) target = $region20
        $region19: #{tpu_custom_call.1} parent=11 // pred_region
          _
        $region20: #{tpu_custom_call.1} parent=11 // pred_fallthru
          _
      $region12: #{tpu_custom_call.1} parent=5 // pred_fallthru
        _
      %p204 = scmp.lt.s32.totalorder %s17, 2
      // Predicated region
      $region21: #{tpu_custom_call.1} parent=5 // pred_check
        %p205 = pneg %p204
      $region22: #{tpu_custom_call.1} parent=5 // pred_check_branch
        %207 = sbr.rel (%p205) target = $region24
      $region23: #{tpu_custom_call.1} parent=5 // pred_region
        // Predicated region
        $region25: #{tpu_custom_call.1} parent=23 // pred_check
          %p208 = pneg %p51
        $region26: #{tpu_custom_call.1} parent=23 // pred_check_branch
          %210 = sbr.rel (%p208) target = $region28
        $region27: #{tpu_custom_call.1} parent=23 // pred_region
          %s211 = smul.u32 2, %s25
          %p212 = scmp.lt.s32.totalorder %s24, 1
          %s213 = scalar_select %p212, %s24, 1
          %p214 = scmp.lt.s32.totalorder %s211, 1
          %s215 = scalar_select %p214, %s211, 1
          %s216 = smul.addr %s213, 2
          %s217 = sadd.s32 %s215, %s216
          %s218 = smul.addr %s217, 4
          %s219 = scalar_lea.vmem %s0, %s218
          %s220 = smul.u32 2, %s25
        $region28: #{tpu_custom_call.1} parent=23 // pred_fallthru
          _
        // Predicated region
        $region29: #{tpu_custom_call.1} parent=23 // pred_check
          %p221 = pneg %p79
        $region30: #{tpu_custom_call.1} parent=23 // pred_check_branch
          %223 = sbr.rel (%p221) target = $region32
        $region31: #{tpu_custom_call.1} parent=23 // pred_region
          %s224 = smul.u32 2, %s25
          %p225 = scmp.lt.s32.totalorder %s24, 1
          %s226 = scalar_select %p225, %s24, 1
          %p227 = scmp.lt.s32.totalorder %s224, 1
          %s228 = scalar_select %p227, %s224, 1
          %s229 = smul.addr %s226, 2
          %s230 = sadd.s32 %s228, %s229
          %s231 = smul.addr %s230, 4
          %s232 = scalar_lea.vmem %s1, %s231
          %s233 = smul.u32 2, %s25
        $region32: #{tpu_custom_call.1} parent=23 // pred_fallthru
          _
        // Predicated region
        $region33: #{tpu_custom_call.1} parent=23 // pred_check
          %p234 = pneg %p107
        $region34: #{tpu_custom_call.1} parent=23 // pred_check_branch
          %236 = sbr.rel (%p234) target = $region36
        $region35: #{tpu_custom_call.1} parent=23 // pred_region
          %s237 = sand.u32 %s97, 1
          %s238 = scalar_lea.sflag [#allocation4], %s237
          %s239 = sand.u32 %s97, 1
          %s240 = smul.addr %s239, 8
          %s241 = scalar_lea.vmem [#allocation3], %s240
          %s242 = smul.u32 2, %s25
          %s244 = ssub.s32 128, 128
          %245 = vsyncadd %s238, %s244
          %s246 = smul.addr %s24, 2
          %s247 = sadd.s32 %s242, %s246
          %s248 = smul.addr %s247, 64
          %s249 = scalar_lea.hbm %s2, %s248
          %s251 = sshll.u32 %s241, 4
          %s252 = int_to_ptr.vmem [resolvable:$true] %s251
          %254 = dma.hbm_to_vmem [thread:$0]  %s249, 128, %s252, %s238
        $region36: #{tpu_custom_call.1} parent=23 // pred_fallthru
          _
      $region24: #{tpu_custom_call.1} parent=5 // pred_fallthru
        _
      %p255 = scmp.le.s32.totalorder 1, %s17
      %p256 = scmp.lt.s32.totalorder %s17, 3
      %p257 = pnand %p255, %p256
      %p258 = pneg %p257
      // Predicated region
      $region37: #{tpu_custom_call.1} parent=5 // pred_check
        _
      $region38: #{tpu_custom_call.1} parent=5 // pred_check_branch
        %260 = sbr.rel (%p257) target = $region40
      $region39: #{tpu_custom_call.1} parent=5 // pred_region
        %s261 = ssub.s32 %s17, 1
        %s262 = sand.u32 %s100, 1
        %s263 = scalar_lea.sflag [#allocation4], %s262
        %s264 = sand.u32 %s100, 1
        %s265 = smul.addr %s264, 8
        %s266 = scalar_lea.vmem [#allocation3], %s265
        // Predicated region
        $region41: #{tpu_custom_call.1} parent=39 // pred_check
          %p267 = pneg %p113
        $region42: #{tpu_custom_call.1} parent=39 // pred_check_branch
          %269 = sbr.rel (%p267) target = $region44
        $region43: #{tpu_custom_call.1} parent=39 // pred_region
          %270 = dma.done %s263, 128
        $region44: #{tpu_custom_call.1} parent=39 // pred_fallthru
          _
        %s271 = smul.u32 2, %s27
        %p272 = scmp.lt.s32.totalorder %s26, 1
        %s273 = scalar_select %p272, %s26, 1
        %p274 = scmp.lt.s32.totalorder %s271, 1
        %s275 = scalar_select %p274, %s271, 1
        %s276 = smul.addr %s273, 2
        %s277 = sadd.s32 %s275, %s276
        %s278 = smul.addr %s277, 4
        %s279 = scalar_lea.vmem %s0, %s278
        %p280 = pneg %p57
        %p281 = pneg %p54
        %s282 = smul.u32 2, %s27
        %p283 = scmp.lt.s32.totalorder %s26, 1
        %s284 = scalar_select %p283, %s26, 1
        %p285 = scmp.lt.s32.totalorder %s282, 1
        %s286 = scalar_select %p285, %s282, 1
        %s287 = smul.addr %s284, 2
        %s288 = sadd.s32 %s286, %s287
        %s289 = smul.addr %s288, 4
        %s290 = scalar_lea.vmem %s1, %s289
        %p291 = pneg %p85
        %p292 = pneg %p82
        %s293 = sand.u32 %s100, 1
        %s294 = scalar_lea.sflag [#allocation4], %s293
        %s295 = sand.u32 %s100, 1
        %s296 = smul.addr %s295, 8
        %s297 = scalar_lea.vmem [#allocation3], %s296
        %p298 = pneg %p113
        %p299 = pneg %p110
        %p300 = pneg %p134
        %p301 = pneg %p131
        %p302 = pneg %p155
        %p303 = pneg %p152
        %p304 = pneg %p183
        %p305 = pneg %p180
        %s306 = sand.u32 %s170, 1
        %s307 = scalar_lea.sflag [#allocation5], %s306
        %s308 = sand.u32 %s170, 1
        %s309 = smul.addr %s308, 8
        %s310 = scalar_lea.vmem [#allocation6], %s309
        %s311 = smul.u32 2, %s27
        %p312 = scmp.lt.s32.totalorder %s26, 1
        %s313 = scalar_select %p312, %s26, 1
        %p314 = scmp.lt.s32.totalorder %s311, 1
        %s315 = scalar_select %p314, %s311, 1
        %s316 = smul.addr %s313, 2
        %s317 = sadd.s32 %s315, %s316
        %s318 = smul.addr %s317, 4
        %s319 = scalar_lea.vmem %s0, %s318
        %s320 = smul.u32 2, %s27
        %s321 = smul.u32 2, %s27
        %p322 = scmp.lt.s32.totalorder %s26, 1
        %s323 = scalar_select %p322, %s26, 1
        %p324 = scmp.lt.s32.totalorder %s321, 1
        %s325 = scalar_select %p324, %s321, 1
        %s326 = smul.addr %s323, 2
        %s327 = sadd.s32 %s325, %s326
        %s328 = smul.addr %s327, 4
        %s329 = scalar_lea.vmem %s1, %s328
        %s330 = smul.u32 2, %s27
        %s331 = smul.u32 2, %s27
        %s332 = smul.u32 2, %s27
        %v333 = vld [vmem:[%s319] sm:$0xff]
        %v335 = vcombine.high %v333, %v333
        %337 = vst [vmem:[#allocation2] sm:$0xf] %v333
        %338 = vst [vmem:[#allocation2 + $0x8] sm:$0xf] %v335
        %v339 = vld [vmem:[%s329] sm:$0xff]
        %v341 = vcombine.low %v339, %v339
        %343 = vst [vmem:[#allocation2] sm:$0xf0] %v341
        %344 = vst [vmem:[#allocation2 + $0x8] sm:$0xf0] %v339
        %v345 = vld [vmem:[%s3] sm:$0xff]
        %v346 = vld [vmem:[%s3 + $0x8] sm:$0xff]
        %v347 = vld [vmem:[#allocation2] sm:$0xff]
        %v348 = vld [vmem:[#allocation2 + $0x8] sm:$0xff]
        %v349 = vld [vmem:[%s4] sm:$0xff]
        %v350 = vld [vmem:[%s4 + $0x8] sm:$0xff]
        %352 = vset.pattern.permute.xlu0 0
        %353 = vperm.xlu0 %352, %v349
        %v354 = vpop.permute.xlu0 %353
        %357 = vset.pattern.permute.xlu0 0
        %358 = vperm.xlu0 %357, %v350
        %v359 = vpop.permute.xlu0 %358
        %vm361 = vcmask 64512
        %v363 = vsel %vm361, %v345, 0
        %v366 = vsel %vm361, %v346, 0
        %368 = vmatprep.subr.mxu0 0.0
        %369 = vmatpush1.msra.mxu0 0.0
        %370 = vmatprep.subr.mxu0 0.0
        %371 = vmatpush1.msra.mxu0 0.0
        %372 = vmatprep.subr.mxu0 0.0
        %373 = vmatpush1.msra.mxu0 0.0
        %374 = vmatprep.subr.mxu0 0.0
        %375 = vmatpush1.msra.mxu0 0.0
        %376 = vmatprep.subr.mxu0 0.0
        %377 = vmatpush1.msra.mxu0 0.0
        %378 = vmatprep.subr.mxu0 0.0
        %379 = vmatpush1.msra.mxu0 0.0
        %380 = vmatprep.subr.mxu0 0.0
        %381 = vmatpush1.msra.mxu0 0.0
        %382 = vmatprep.subr.mxu0 0.0
        %383 = vmatpush1.msra.mxu0 0.0
        %384 = vmatprep.subr.mxu0 0.0
        %385 = vmatpush1.msra.mxu0 0.0
        %386 = vmatprep.subr.mxu0 0.0
        %387 = vmatpush1.msra.mxu0 0.0
        %388 = vmatprep.subr.mxu0 0.0
        %389 = vmatpush1.msra.mxu0 0.0
        %390 = vmatprep.subr.mxu0 0.0
        %391 = vmatpush1.msra.mxu0 0.0
        %392 = vmatprep.subr.mxu0 0.0
        %393 = vmatpush1.msra.mxu0 0.0
        %394 = vmatprep.subr.mxu0 0.0
        %395 = vmatpush1.msra.mxu0 0.0
        %396 = vmatprep.subr.mxu0 0.0
        %397 = vmatpush1.msra.mxu0 0.0
        %398 = vmatprep.subr.mxu0 %v348
        %399 = vmatpush1.msra.mxu0 %v347
        %400 = vmatprep.subr.mxu0 0.0
        %401 = vmatpush2.msra.mxu0 0.0
        %402 = vmatprep.subr.mxu0 0.0
        %403 = vmatpush2.msra.mxu0 0.0
        %404 = vmatprep.subr.mxu0 0.0
        %405 = vmatpush2.msra.mxu0 0.0
        %406 = vmatprep.subr.mxu0 0.0
        %407 = vmatpush2.msra.mxu0 0.0
        %408 = vmatprep.subr.mxu0 0.0
        %409 = vmatpush2.msra.mxu0 0.0
        %410 = vmatprep.subr.mxu0 0.0
        %411 = vmatpush2.msra.mxu0 0.0
        %412 = vmatprep.subr.mxu0 0.0
        %413 = vmatpush2.msra.mxu0 0.0
        %414 = vmatprep.subr.mxu0 0.0
        %415 = vmatpush2.msra.mxu0 0.0
        %416 = vmatprep.subr.mxu0 0.0
        %417 = vmatpush2.msra.mxu0 0.0
        %418 = vmatprep.subr.mxu0 0.0
        %419 = vmatpush2.msra.mxu0 0.0
        %420 = vmatprep.subr.mxu0 0.0
        %421 = vmatpush2.msra.mxu0 0.0
        %422 = vmatprep.subr.mxu0 0.0
        %423 = vmatpush2.msra.mxu0 0.0
        %424 = vmatprep.subr.mxu0 0.0
        %425 = vmatpush2.msra.mxu0 0.0
        %426 = vmatprep.subr.mxu0 0.0
        %427 = vmatpush2.msra.mxu0 0.0
        %428 = vmatprep.subr.mxu0 0.0
        %429 = vmatpush2.msra.mxu0 0.0
        %430 = vmatprep.subr.mxu0 0.0
        %431 = vmatpush2.msra.mxu0 0.0
        %432 = vmatprep.mubr.f32.mxu0 0.0
        %433 = vmatmul.mubr.f32.gmra.mxu0 %v363
        %v434 = vpop.f32.mrf.mxu0
        %v435 = vadd.f32 %v354, %v434
        %v436 = vpop.f32.mrf.mxu0
        %v437 = vadd.f32 %v354, %v436
        %438 = vmatprep.mubr.f32.mxu0 0.0
        %439 = vmatmul.mubr.f32.gmra.mxu0 %v366
        %v440 = vpop.f32.mrf.mxu0
        %v441 = vadd.f32 %v359, %v440
        %v442 = vpop.f32.mrf.mxu0
        %v443 = vadd.f32 %v359, %v442
        %444 = vdwg.mxu0
        %v445 = vmul.f32 %v435, 0.5
        %v446 = vmul.f32 %v437, 0.5
        %v447 = vtanh.pop %v445
        %v448 = vtanh.pop %v446
        %v449 = vadd.f32 %v447, 1.0
        %v450 = vadd.f32 %v448, 1.0
        %v451 = vmul.f32 %v449, 0.5
        %v452 = vmul.f32 %v450, 0.5
        %v453 = vtanh.pop %v435
        %v454 = vtanh.pop %v437
        %v455 = vmul.f32 %v441, 0.5
        %v456 = vmul.f32 %v443, 0.5
        %v457 = vtanh.pop %v455
        %v458 = vtanh.pop %v456
        %v459 = vadd.f32 %v457, 1.0
        %v460 = vadd.f32 %v458, 1.0
        %v461 = vmul.f32 %v459, 0.5
        %v462 = vmul.f32 %v460, 0.5
        %v463 = vtanh.pop %v441
        %v464 = vtanh.pop %v443
        %v467 = vrot.slane %v453, 4
        %v468 = vrot.slane %v454, 4
        %v471 = vmul.f32 %v451, %v467
        %v472 = vmul.f32 %v452, %v468
        %v473 = vld [vmem:[%s266] sm:$0xff]
        %v475 = vcombine.high %v473, %v473
        %v477 = vmul.f32 %v471, %v473
        %v478 = vmul.f32 %v472, %v475
        %v481 = vrot.slane %v463, 4
        %v482 = vrot.slane %v464, 4
        %v485 = vmul.f32 %v461, %v481
        %v486 = vmul.f32 %v462, %v482
        %v487 = vadd.f32 %v477, %v485
        %v488 = vadd.f32 %v478, %v486
        %v491 = vcombine.low %v487, %v488
        %493 = vst [vmem:[%s310] sm:$0xff] %v491
        %s494 = sand.u32 %s170, 1
        %s495 = scalar_lea.sflag [#allocation5], %s494
        %s496 = sand.u32 %s170, 1
        %s497 = smul.addr %s496, 8
        %s498 = scalar_lea.vmem [#allocation6], %s497
        // Predicated region
        $region45: #{tpu_custom_call.1} parent=39 // pred_check
          %p499 = pneg %p180
        $region46: #{tpu_custom_call.1} parent=39 // pred_check_branch
          %501 = sbr.rel (%p499) target = $region48
        $region47: #{tpu_custom_call.1} parent=39 // pred_region
          %s502 = smul.u32 2, %s27
          %s504 = ssub.s32 128, 128
          %505 = vsyncadd %s495, %s504
          %s506 = smul.addr %s26, 2
          %s507 = sadd.s32 %s502, %s506
          %s508 = smul.addr %s507, 64
          %s509 = scalar_lea.hbm %s5, %s508
          %s511 = sshll.u32 %s498, 4
          %s512 = int_to_ptr.vmem [resolvable:$true] %s511
          %514 = dma.vmem_to_hbm [thread:$0]  %s512, 128, %s509, %s495
        $region48: #{tpu_custom_call.1} parent=39 // pred_fallthru
          _
      $region40: #{tpu_custom_call.1} parent=5 // pred_fallthru
        _
      %p515 = scmp.le.s32.totalorder 2, %s17
      // Predicated region
      $region49: #{tpu_custom_call.1} parent=5 // pred_check
        %p516 = pneg %p515
      $region50: #{tpu_custom_call.1} parent=5 // pred_check_branch
        %518 = sbr.rel (%p516) target = $region52
      $region51: #{tpu_custom_call.1} parent=5 // pred_region
        %s519 = ssub.s32 %s17, 2
        // Predicated region
        $region53: #{tpu_custom_call.1} parent=51 // pred_check
          %p520 = pneg %p186
        $region54: #{tpu_custom_call.1} parent=51 // pred_check_branch
          %522 = sbr.rel (%p520) target = $region56
        $region55: #{tpu_custom_call.1} parent=51 // pred_region
          %s523 = sand.u32 %s171, 1
          %s524 = scalar_lea.sflag [#allocation5], %s523
          %s525 = sand.u32 %s171, 1
          %s526 = smul.addr %s525, 8
          %s527 = scalar_lea.vmem [#allocation6], %s526
          %528 = dma.done %s524, 128
        $region56: #{tpu_custom_call.1} parent=51 // pred_fallthru
          _
      $region52: #{tpu_custom_call.1} parent=5 // pred_fallthru
        _
    $region6: #{tpu_custom_call.1} parent=1 // loop_footer
      %s21 = sadd.s32 1, %s17
    $region7: #{tpu_custom_call.1} parent=1 // loop_footer_branch
      %16 = sbr.rel target = $region3
    $region8: #{tpu_custom_call.1} parent=1 // loop_exit
      _
    %529 = vsyncpa [#allocation4], 1
    %s530 = scalar_lea.sflag [#allocation4], 1
    %531 = vsyncpa %s530, 1
    %532 = vsyncpa [#allocation5], 1
    %s533 = scalar_lea.sflag [#allocation5], 1
    %534 = vsyncpa %s533, 1

</llo_original>
